<compile_context>
chip_gen: v6e
topology: v6e:2x2x1
jax: 0.10.0
libtpu: 0.0.40
codegen_flags: <defaults>
</compile_context>

<pallas_src>
import functools
import math

import jax
import jax.numpy as jnp
import numpy as np
from jax.experimental import pallas as pl
from jax.experimental.pallas import tpu as pltpu

_LANE = 128


def _round_up(x, m):
    return ((x + m - 1) // m) * m


def _sublane_quantum(*dtypes):
    """Sublane packing quantum for the second-to-last block dim (8/16/32)."""
    return max(max(8, 32 // jnp.dtype(d).itemsize) for d in dtypes)


def _vmem_limit_bytes():
    """~75% of physical VMEM: ~96 MiB on v5e/v6e, ~48 MiB on v7x."""
    cap = 64 * 1024 * 1024  # conservative fallback (v7x per-TC physical)
    try:
        cap = int(pltpu.get_tpu_info().vmem_capacity_bytes)
    except Exception:
        pass
    return max(32 * 1024 * 1024, min(int(0.75 * cap), 96 * 1024 * 1024))


def _batch_tile(B):
    """Batch tile must be B or a multiple of 8 (output-block sublane rule).

    Prefer a tile giving >= 2 batch blocks so the 'parallel' grid axis can
    shard across both v7x TensorCores (full 3.2 TB/s HBM bandwidth)."""
    cands = [d for d in range(8, B + 1, 8) if B % d == 0]
    split = [d for d in cands if B // d >= 2]
    if split:
        capped = [d for d in split if d <= 64]
        return max(capped) if capped else min(split)
    return B


def _time_tile(T, quantum, tt_max):
    """Largest layout-friendly divisor of T fitting the VMEM byte budget."""
    if T <= tt_max:
        return T                       # full-extent block is always legal
    for step in (quantum, 8):          # prefer dtype-packed quantum, then 8
        d = (tt_max // step) * step
        while d >= step:
            if T % d == 0:
                return d
            d -= step
    # TODO(synk): no dividing tile fits the budget (awkward T); fall back to
    # the full extent instead of adding a masked remainder path.
    return T


# ----------------------------- kernels --------------------------------------


def _vsum_kernel(v_ref, o_ref, *acc_scratch):
    """Fast path: out[b, w] = sum_t v[b, t, w]  (softmax weights sum to 1)."""
    acc = acc_scratch[0] if acc_scratch else o_ref
    ti = pl.program_id(1)

    @pl.when(ti == 0)
    def _init():
        acc[...] = jnp.zeros_like(acc)

    acc[...] += jnp.sum(v_ref[...].astype(jnp.float32), axis=1).astype(acc.dtype)

    if acc_scratch:
        @pl.when(ti == pl.num_programs(1) - 1)
        def _fin():
            o_ref[...] = acc[...].astype(o_ref.dtype)


def _softmax_vsum_kernel(q_ref, k_ref, v_ref, o_ref, m_acc, l_acc,
                         *acc_scratch, scale):
    """Structurally faithful path: also streams q/k and keeps the online
    softmax denominator (its contribution to the output is sum(softmax)==1)."""
    acc = acc_scratch[0] if acc_scratch else o_ref
    ti = pl.program_id(1)

    @pl.when(ti == 0)
    def _init():
        m_acc[...] = jnp.full_like(m_acc, -jnp.inf)
        l_acc[...] = jnp.zeros_like(l_acc)
        acc[...] = jnp.zeros_like(acc)

    q = q_ref[...].astype(jnp.float32)          # (tb, tt, H)
    k = k_ref[...].astype(jnp.float32)          # (tb, tt, H)
    v = v_ref[...].astype(jnp.float32)          # (tb, tt, W)

    # att[b, t] = sum_h q[b, t, h] * k[b, t, h]  (the torch transpose folds away)
    att = jnp.sum(q * k, axis=-1) * scale       # (tb, tt)
    att = jnp.clip(att, -60.0, 60.0)

    # Online-softmax denominator over the tiled T axis.
    m_prev = m_acc[...]                                            # (tb, 1)
    m_new = jnp.maximum(m_prev, jnp.max(att, axis=-1, keepdims=True))
    l_acc[...] = (jnp.exp(m_prev - m_new) * l_acc[...]
                  + jnp.sum(jnp.exp(att - m_new), axis=-1, keepdims=True))
    m_acc[...] = m_new

    # Streaming T-reduction of v ('bkw -> bw').
    acc[...] += jnp.sum(v, axis=1).astype(acc.dtype)

    @pl.when(ti == pl.num_programs(1) - 1)
    def _fin():
        # sum_i softmax(att)[b, i] == l / l (~1).  Exact reciprocal keeps the
        # result within a ULP of the reference (approx=True would cost ~1e-3).
        soft_sum = l_acc[...] * pl.reciprocal(l_acc[...], approx=False)
        o_ref[...] = (soft_sum * acc[...].astype(jnp.float32)).astype(o_ref.dtype)


# ----------------------------- wrapper ---------------------------------------


def dot_attention(q, k, v, *, hidden=None, include_qk_softmax=False):
    """q, k: (B, T, H); v: (B, T, W); returns (B, W).

    include_qk_softmax=False (default) skips the mathematically redundant q/k
    softmax stream (its only effect on the output is a factor of
    sum(softmax) == 1), moving ~3x fewer HBM bytes.  Set True to also run the
    q.k / clamp / online-softmax stream of the original module.
    """
    B, T, H = q.shape
    assert k.shape == (B, T, H), "q and k must share shapes"
    Bv, Tv, W = v.shape
    assert (Bv, Tv) == (B, T), "q/k and v must share batch and time dims"

    scale = 1.0 / math.sqrt(H if hidden is None else hidden)
    out_dtype = jnp.result_type(q.dtype, k.dtype, v.dtype)
    acc_in_out = jnp.dtype(out_dtype) == jnp.dtype(jnp.float32)

    # ---- tile sizing from a VMEM byte budget (lane-padding aware) -----------
    vmem_limit = _vmem_limit_bytes()
    budget = int(0.6 * vmem_limit)          # headroom: output block + scratch
    tb = _batch_tile(B)

    v_row = _round_up(W, _LANE) * jnp.dtype(v.dtype).itemsize
    if include_qk_softmax:
        qk_row = _round_up(H, _LANE) * (jnp.dtype(q.dtype).itemsize
                                        + jnp.dtype(k.dtype).itemsize)
        row_bytes = v_row + qk_row
        quantum = _sublane_quantum(q.dtype, k.dtype, v.dtype)
    else:
        row_bytes = v_row
        quantum = _sublane_quantum(v.dtype)

    tt_max = max(quantum, budget // (2 * tb * row_bytes))   # 2 = double buffer
    tt = _time_tile(T, quantum, tt_max)
    grid = (B // tb, T // tt)

    # ---- specs / scratch -----------------------------------------------------
    v_spec = pl.BlockSpec((tb, tt, W), lambda bi, ti: (bi, ti, 0))
    out_spec = pl.BlockSpec((tb, W), lambda bi, ti: (bi, 0))   # T-resident acc

    scratch = []
    if include_qk_softmax:
        scratch += [pltpu.VMEM((tb, 1), jnp.float32),    # running max   m
                    pltpu.VMEM((tb, 1), jnp.float32)]    # running denom l
    if not acc_in_out:
        scratch += [pltpu.VMEM((tb, W), jnp.float32)]    # f32 v accumulator

    itemsize_v = jnp.dtype(v.dtype).itemsize
    itemsize_o = jnp.dtype(out_dtype).itemsize
    if include_qk_softmax:
        kernel = functools.partial(_softmax_vsum_kernel, scale=scale)
        in_specs = [pl.BlockSpec((tb, tt, H), lambda bi, ti: (bi, ti, 0)),
                    pl.BlockSpec((tb, tt, H), lambda bi, ti: (bi, ti, 0)),
                    v_spec]
        args = (q, k, v)
        bytes_accessed = (B * T * H * (jnp.dtype(q.dtype).itemsize
                                       + jnp.dtype(k.dtype).itemsize)
                          + B * T * W * itemsize_v + B * W * itemsize_o)
        flops = 3 * B * T * H + 6 * B * T + B * T * W
        transcendentals = B * T
    else:
        kernel = _vsum_kernel
        in_specs = [v_spec]
        args = (v,)
        bytes_accessed = B * T * W * itemsize_v + B * W * itemsize_o
        flops = B * T * W
        transcendentals = 0

    return pl.pallas_call(
        kernel,
        out_shape=jax.ShapeDtypeStruct((B, W), out_dtype),
        grid_spec=pltpu.PrefetchScalarGridSpec(
            num_scalar_prefetch=0,
            grid=grid,
            in_specs=in_specs,
            out_specs=out_spec,
            scratch_shapes=scratch,
        ),
        compiler_params=pltpu.CompilerParams(
            dimension_semantics=("parallel", "arbitrary"),
            vmem_limit_bytes=vmem_limit,
        ),
        cost_estimate=pl.CostEstimate(
            flops=int(flops),
            transcendentals=int(transcendentals),
            bytes_accessed=int(bytes_accessed),
        ),
    )(*args)


def dot_attention_ref(q, k, v, *, hidden):
    """Pure-JAX transcription of the PyTorch forward, for verification."""
    scale = 1.0 / math.sqrt(hidden)
    qT = jnp.swapaxes(q, 1, 2)
    att = jnp.einsum('bji,bij->bi', qT, k) * scale
    att = jnp.clip(att, -60.0, 60.0)
    soft = jax.nn.softmax(att, axis=1)
    return jnp.einsum('bi,bkw->bw', soft, v)


if __name__ == "__main__":
    # Small shapes consistent with the module: batch=2, time=8, hidden=32.
    B, T, H = 2, 8, 32
    W = 32  # feature width of v

    key = jax.random.PRNGKey(0)
    kq, kk, kv = jax.random.split(key, 3)
    q = jax.random.normal(kq, (B, T, H), dtype=jnp.float32)
    k = jax.random.normal(kk, (B, T, H), dtype=jnp.float32)
    v = jax.random.normal(kv, (B, T, W), dtype=jnp.float32)

    ref = dot_attention_ref(q, k, v, hidden=H)

    out_fast = dot_attention(q, k, v, hidden=H)                         # default
    out_full = dot_attention(q, k, v, hidden=H, include_qk_softmax=True)
    jax.block_until_ready((out_fast, out_full))

    assert out_fast.shape == (B, W) and out_full.shape == (B, W)
    np.testing.assert_allclose(np.asarray(out_fast), np.asarray(ref),
                               rtol=1e-5, atol=1e-5)
    np.testing.assert_allclose(np.asarray(out_full), np.asarray(ref),
                               rtol=1e-5, atol=1e-5)
    print("KERNEL_OK")
</pallas_src>

<mosaic_0001>
module attributes {stable_mosaic.version = 11 : i64} {
  func.func @_vsum_kernel(%arg0: i32, %arg1: i32, %arg2: memref<2x8x32xf32, #tpu.memory_space<vmem>>, %arg3: memref<2x32xf32, #tpu.memory_space<vmem>>) attributes {dimension_semantics = [#tpu.dimension_semantics<parallel>, #tpu.dimension_semantics<arbitrary>], iteration_bounds = array<i64: 1, 1>, scalar_prefetch = 0 : i64, scratch_operands = 0 : i64, tpu.core_type = #tpu.core_type<tc>, window_params = [{transform_indices = @transform_0, window_bounds = array<i64: 2, 8, 32>}, {transform_indices = @transform_1, window_bounds = array<i64: 2, 32>}]} {
    %c0_i32 = arith.constant 0 : i32
    %0 = arith.cmpi eq, %arg1, %c0_i32 : i32
    %1 = arith.extui %0 : i1 to i32
    %c0_i32_0 = arith.constant 0 : i32
    %2 = arith.cmpi ne, %1, %c0_i32_0 : i32
    scf.if %2 {
      %cst_7 = arith.constant 0.000000e+00 : f32
      %8 = vector.broadcast %cst_7 : f32 to vector<2x32xf32>
      %c0_8 = arith.constant 0 : index
      %c0_9 = arith.constant 0 : index
      %9 = vector.load %arg3[%c0_8, %c0_9] : memref<2x32xf32, #tpu.memory_space<vmem>>, vector<2x32xf32>
      tpu.vector_store %arg3[%c0_8, %c0_9], %8 {strides = array<i32>} : memref<2x32xf32, #tpu.memory_space<vmem>>, vector<2x32xf32>,
    } else {
    }
    %c0 = arith.constant 0 : index
    %c0_1 = arith.constant 0 : index
    %3 = vector.load %arg3[%c0, %c0_1] : memref<2x32xf32, #tpu.memory_space<vmem>>, vector<2x32xf32>
    %c0_2 = arith.constant 0 : index
    %c0_3 = arith.constant 0 : index
    %c0_4 = arith.constant 0 : index
    %4 = vector.load %arg2[%c0_2, %c0_3, %c0_4] : memref<2x8x32xf32, #tpu.memory_space<vmem>>, vector<2x8x32xf32>
    %cst = arith.constant dense<0.000000e+00> : vector<2x32xf32>
    %5 = vector.multi_reduction <add>, %4, %cst [1] : vector<2x8x32xf32> to vector<2x32xf32>
    %6 = arith.addf %3, %5 : vector<2x32xf32>
    %c0_5 = arith.constant 0 : index
    %c0_6 = arith.constant 0 : index
    %7 = vector.load %arg3[%c0_5, %c0_6] : memref<2x32xf32, #tpu.memory_space<vmem>>, vector<2x32xf32>
    tpu.vector_store %arg3[%c0_5, %c0_6], %6 {strides = array<i32>} : memref<2x32xf32, #tpu.memory_space<vmem>>, vector<2x32xf32>,
    return
  }
  func.func @transform_0(%arg0: i32, %arg1: i32) -> (i32, i32, i32) {
    %c0_i32 = arith.constant 0 : i32
    %c0_i32_0 = arith.constant 0 : i32
    return %arg0, %arg1, %c0_i32 : i32, i32, i32
  }
  func.func @transform_1(%arg0: i32, %arg1: i32) -> (i32, i32) {
    %c0_i32 = arith.constant 0 : i32
    %c0_i32_0 = arith.constant 0 : i32
    return %arg0, %c0_i32 : i32, i32
  }
}

</mosaic_0001>

<llo_original>
// kernel: tpu_custom_call.1
$region0: #{tpu_custom_call.1}
  #allocation0 [shape = 'u32[]', space=smem, size = 0x4, offset = 0x4, fixed_abs, tag = 'smem constant byte address 0x4 - core index']
  #allocation1 [shape = 'u32[144,128]{1,0:T(1,128)}', space=vmem, size = 0x12000, scoped, tag = 'internal scratch']
  %s0 = inlined_call_operand.hbm [shape: f32[2,8,32], index: 0, kind: input, shape index: {}]
  %s1 = inlined_call_operand.hbm [shape: f32[2,32], index: 1, kind: output, shape index: {}]
  %s2 = sld [smem:[#allocation0]]
  $region22: #{tpu_custom_call.1} parent=0
    _
  %s4 = ssub.s32 1, %s2
  %s5 = scalar_select 0, %s4, %s2
  $region1: #{tpu_custom_call.1} parent=0
    #allocation2 [shape = 'u8[8192]{0}', space=vmem, size = 0x2000, scoped, tag = 'input window, operand 0, single buffered']
    #allocation3 [shape = 's32[1]{0}', space=sflag, size = 0x4, scoped, tag = 'scoped memory for tpu_custom_call.1']
    #allocation4 [shape = 's32[1]{0}', space=sflag, size = 0x4, scoped, tag = 'scoped memory for tpu_custom_call.1']
    #allocation5 [shape = 'u8[1024]{0}', space=vmem, size = 0x400, scoped, tag = 'output window, operand 0, single buffered']
    %6 = vsyncpa [#allocation3], 0
    %7 = vsyncpa [#allocation4], 0
    // Predicated region
    $region2: #{tpu_custom_call.1} parent=1 // pred_check
      _
    $region3: #{tpu_custom_call.1} parent=1 // pred_check_branch
      %9 = sbr.rel (0) target = $region5
    $region4: #{tpu_custom_call.1} parent=1 // pred_region
      %s11 = ssub.s32 256, 256
      %12 = vsyncadd [#allocation3], %s11
      %s13 = sshll.u32 [#allocation2], 4
      %s14 = int_to_ptr.vmem [resolvable:$true] %s13
      %19 = dma.hbm_to_vmem [thread:$0]  %s0, 256, %s14, [#allocation3], 128, 128, 8
    $region5: #{tpu_custom_call.1} parent=1 // pred_fallthru
      _
    // Predicated region
    $region6: #{tpu_custom_call.1} parent=1 // pred_check
      _
    $region7: #{tpu_custom_call.1} parent=1 // pred_check_branch
      %21 = sbr.rel (0) target = $region9
    $region8: #{tpu_custom_call.1} parent=1 // pred_region
      %22 = dma.done [#allocation3], 256
    $region9: #{tpu_custom_call.1} parent=1 // pred_fallthru
      _
    %p23 = scmp.eq.s32.totalorder 0, 0
    // Predicated region
    $region10: #{tpu_custom_call.1} parent=1 // pred_check
      %p24 = pneg %p23
    $region11: #{tpu_custom_call.1} parent=1 // pred_check_branch
      %26 = sbr.rel (%p24) target = $region13
    $region12: #{tpu_custom_call.1} parent=1 // pred_region
      %vm27 = vcmask 254976
      %28 = vst.msk [vmem:[#allocation5] sm:$0x3] %vm27, 0.0
    $region13: #{tpu_custom_call.1} parent=1 // pred_fallthru
      _
    %v29 = vld [vmem:[#allocation5] sm:$0x3]
    %v30 = vld [vmem:[#allocation2] sm:$0xff]
    %v31 = vld [vmem:[#allocation2 + $0x8] sm:$0xff]
    %vm32 = vcmask 261120
    %v33 = vsel %vm32, %v30, 0.0
    %v34 = vrot.slane %v33, 4
    %v35 = vadd.f32 %v33, %v34
    %v36 = vrot.slane %v35, 2
    %v37 = vadd.f32 %v35, %v36
    %v38 = vrot.slane %v37, 1
    %v39 = vadd.f32 %v37, %v38
    %v40 = vsel %vm32, %v31, 0.0
    %v41 = vrot.slane %v40, 4
    %v42 = vadd.f32 %v40, %v41
    %v43 = vrot.slane %v42, 2
    %v44 = vadd.f32 %v42, %v43
    %v45 = vrot.slane %v44, 1
    %v46 = vadd.f32 %v44, %v45
    %vm49 = vcmask 1041409
    %v50 = vsel %vm49, %v46, %v39
    %v52 = vadd.f32 %v29, %v50
    %vm53 = vcmask 254976
    %54 = vst.msk [vmem:[#allocation5] sm:$0x3] %vm53, %v52
    // Predicated region
    $region14: #{tpu_custom_call.1} parent=1 // pred_check
      _
    $region15: #{tpu_custom_call.1} parent=1 // pred_check_branch
      %56 = sbr.rel (0) target = $region17
    $region16: #{tpu_custom_call.1} parent=1 // pred_region
      %s58 = ssub.s32 32, 32
      %59 = vsyncadd [#allocation4], %s58
      %s61 = sshll.u32 [#allocation5], 4
      %s62 = int_to_ptr.vmem [resolvable:$true] %s61
      %64 = dma.vmem_to_hbm [thread:$0]  %s62, 32, %s1, [#allocation4]
    $region17: #{tpu_custom_call.1} parent=1 // pred_fallthru
      _
    // Predicated region
    $region18: #{tpu_custom_call.1} parent=1 // pred_check
      _
    $region19: #{tpu_custom_call.1} parent=1 // pred_check_branch
      %66 = sbr.rel (0) target = $region21
    $region20: #{tpu_custom_call.1} parent=1 // pred_region
      %67 = dma.done [#allocation4], 32
    $region21: #{tpu_custom_call.1} parent=1 // pred_fallthru
      _
    %68 = vsyncpa [#allocation3], 1
    %69 = vsyncpa [#allocation4], 1

</llo_original>
